<compile_context>
chip_gen: v7x
topology: tpu7x:2x2x1
jax: 0.10.0
libtpu: 0.0.40
codegen_flags: <defaults>
</compile_context>

<pallas_src>
import functools

import jax
import jax.numpy as jnp
from jax.experimental import pallas as pl
from jax.experimental.pallas import tpu as pltpu


def _round_up(v, m):
    return ((v + m - 1) // m) * m


_BLOCK_TARGET_BYTES = 2 * 1024 * 1024  # ~1-2 MiB cw blocks keep the stream at HBM roofline


# ---------------------------------------------------------------------------
# Path A ("narrow", T < 128): batch on the 128-wide lane axis, sequence on
# sublanes. Needs one fused slice+transpose pass in the wrapper, but keeps every
# vreg lane-dense, which matters when T is tiny.
# ---------------------------------------------------------------------------
def _dash_narrow_kernel(w_ref, cw_ref, tail_ref, o_ref):
    # w_ref   : SMEM (4,)     -> a, dc, s1, s2 (scalar prefetch)
    # cw_ref  : VMEM (T, tb)  -> x[:, :, F-2], batch on lanes
    # tail_ref: VMEM (2, tb)  -> row 0: x[:, T-1, F-1], row 1: x[:, T-1, F-3]
    # o_ref   : VMEM (1, tb)  -> sigmoid(recall), lane-dense
    a, dc, s1, s2 = w_ref[0], w_ref[1], w_ref[2], w_ref[3]
    cw = cw_ref[...].astype(jnp.float32)
    log_sum = jnp.sum(jnp.log1p(cw), axis=0, keepdims=True)          # (1, tb)
    xt = tail_ref[0:1, :].astype(jnp.float32)
    nw = tail_ref[1:2, :].astype(jnp.float32)
    recall = a - dc * xt + s1 * log_sum + s2 * jnp.log1p(nw)
    o_ref[...] = jax.nn.sigmoid(recall)


def _dash_narrow(cw, xt, nw, w):
    B, T = cw.shape
    cw_t = jnp.transpose(cw)                    # fused slice+transpose: one pass over B*T
    tail = jnp.stack([xt, nw], axis=0)          # (2, B) -- tiny

    # Lane tile scales with T so the cw block is ~1-2 MiB (no fixed 512).
    tb = _round_up(max(1, _BLOCK_TARGET_BYTES // (4 * T)), 128)
    tb = max(128, min(tb, 2048, _round_up(B, 128)))
    # v7x: make sure the "parallel" batch axis spans both TensorCores.
    if B >= 256 and pl.cdiv(B, tb) < 2:
        tb = _round_up(pl.cdiv(B, 2), 128)

    out = pl.pallas_call(
        _dash_narrow_kernel,
        out_shape=jax.ShapeDtypeStruct((1, B), jnp.float32),
        grid_spec=pltpu.PrefetchScalarGridSpec(
            num_scalar_prefetch=1,                       # w -> SMEM
            grid=(pl.cdiv(B, tb),),
            in_specs=[
                pl.BlockSpec((T, tb), lambda i, w: (0, i)),
                pl.BlockSpec((2, tb), lambda i, w: (0, i)),
            ],
            out_specs=pl.BlockSpec((1, tb), lambda i, w: (0, i)),
        ),
        compiler_params=pltpu.CompilerParams(
            dimension_semantics=("parallel",),
            vmem_limit_bytes=32 * 1024 * 1024,           # safe ceiling on v7x's 64 MiB
        ),
    )(w, cw_t, tail)
    return out[0][:, None]                               # (B, 1)


# ---------------------------------------------------------------------------
# Path B ("wide", T >= 128): transpose-free. cw stays (B, T): batch on sublanes,
# T on lanes (last grid axis "arbitrary" chunks T for very long sequences).
# ---------------------------------------------------------------------------
def _dash_wide_kernel(T, tk, w_ref, cw_ref, tail_ref, o_ref, acc_ref):
    # w_ref   : SMEM (4,)
    # cw_ref  : VMEM (tb, tk) -> x[:, :, F-2] chunk, batch on sublanes
    # tail_ref: VMEM (tb, 2)  -> col 0: x[:, T-1, F-1], col 1: x[:, T-1, F-3] (resident over k)
    # o_ref   : VMEM (tb, 1)  -> accumulator-resident output block
    # acc_ref : VMEM (tb, 1)  -> running f32 log1p sum
    k = pl.program_id(1)

    @pl.when(k == 0)
    def _():
        acc_ref[...] = jnp.zeros_like(acc_ref)

    vals = jnp.log1p(cw_ref[...].astype(jnp.float32))                # (tb, tk)
    if T % tk != 0:
        # Ragged last T-chunk: mask out-of-range lanes (stale VMEM) with 0.
        lane = jax.lax.broadcasted_iota(jnp.int32, vals.shape, 1)
        vals = jnp.where(lane < (T - k * tk), vals, 0.0)
    acc_ref[...] += jnp.sum(vals, axis=-1, keepdims=True)            # (tb, 1)

    @pl.when(k == pl.num_programs(1) - 1)
    def _():
        a, dc, s1, s2 = w_ref[0], w_ref[1], w_ref[2], w_ref[3]
        xt = tail_ref[:, 0:1].astype(jnp.float32)
        nw = tail_ref[:, 1:2].astype(jnp.float32)
        recall = a - dc * xt + s1 * acc_ref[...] + s2 * jnp.log1p(nw)
        o_ref[...] = jax.nn.sigmoid(recall)


def _dash_wide(cw, xt, nw, w):
    B, T = cw.shape
    tail = jnp.stack([xt, nw], axis=1)          # (B, 2) -- tiny

    rows = _BLOCK_TARGET_BYTES // (4 * T)
    if rows >= 8:
        tb = max(8, min((rows // 8) * 8, 4096, _round_up(B, 8)))
        tk = T                                   # whole sequence on lanes, single T step
    else:
        # Very long sequences: chunk T so the resident block stays ~2 MiB.
        tb = 8
        tk = (_BLOCK_TARGET_BYTES // (4 * 8) // 128) * 128
    # v7x: make sure the "parallel" batch axis spans both TensorCores.
    if B >= 256 and pl.cdiv(B, tb) < 2:
        tb = _round_up(pl.cdiv(B, 2), 8)

    kernel = functools.partial(_dash_wide_kernel, T, tk)
    out = pl.pallas_call(
        kernel,
        out_shape=jax.ShapeDtypeStruct((B, 1), jnp.float32),
        grid_spec=pltpu.PrefetchScalarGridSpec(
            num_scalar_prefetch=1,                       # w -> SMEM
            grid=(pl.cdiv(B, tb), pl.cdiv(T, tk)),
            in_specs=[
                pl.BlockSpec((tb, tk), lambda i, k, w: (i, k)),
                pl.BlockSpec((tb, 2), lambda i, k, w: (i, 0)),   # resident across k
            ],
            out_specs=pl.BlockSpec((tb, 1), lambda i, k, w: (i, 0)),
            scratch_shapes=[pltpu.VMEM((tb, 1), jnp.float32)],
        ),
        compiler_params=pltpu.CompilerParams(
            dimension_semantics=("parallel", "arbitrary"),
            vmem_limit_bytes=32 * 1024 * 1024,
        ),
    )(w, cw, tail)
    return out                                           # (B, 1)


def dash_forward(x, w):
    """x: (B, T, F), w: (4,) -> (B, 1) float32 = sigmoid(recall)."""
    B, T, F = x.shape
    assert F >= 3 and T >= 1, (B, T, F)
    w = w.astype(jnp.float32)
    cw = x[:, :, F - 2]             # (B, T): the only full feature column the model reads
    xt = x[:, T - 1, F - 1]         # (B,)
    nw = x[:, T - 1, F - 3]         # (B,)
    if T >= 128:
        return _dash_wide(cw, xt, nw, w)
    return _dash_narrow(cw, xt, nw, w)


def dash_reference(x, w):
    a, dc, s1, s2 = w[0], w[1], w[2], w[3]
    d = dc * x[:, :, -1]
    cw = x[:, :, -2]
    nw = x[:, :, -3]
    recall = (a - d[:, -1]
              + jnp.sum(s1 * jnp.log1p(cw), axis=1)
              + s2 * jnp.log1p(nw)[:, -1])
    return jax.nn.sigmoid(recall)[:, None]


if __name__ == "__main__":
    # Deterministic parameters from the module's __init__.
    w = jnp.array([0.2783, 0.8131, 0.4252, 1.0056], dtype=jnp.float32)
    dash = jax.jit(dash_forward)

    # Small synthetic input consistent with forward(): [batch, seq, features].
    B, T, F = 4, 8, 8
    x = jax.random.uniform(jax.random.PRNGKey(0), (B, T, F), dtype=jnp.float32,
                           minval=0.0, maxval=3.0)
    out = jax.block_until_ready(dash(x, w))
    ref = dash_reference(x, w)
    assert out.shape == (B, 1), out.shape
    assert jnp.allclose(out, ref, atol=1e-5, rtol=1e-5), (out, ref)

    # Also exercise the transpose-free (T >= 128) path at a small shape.
    B2, T2, F2 = 8, 128, 5
    x2 = jax.random.uniform(jax.random.PRNGKey(1), (B2, T2, F2), dtype=jnp.float32,
                            minval=0.0, maxval=0.05)
    out2 = jax.block_until_ready(dash(x2, w))
    ref2 = dash_reference(x2, w)
    assert out2.shape == (B2, 1), out2.shape
    assert jnp.allclose(out2, ref2, atol=1e-5, rtol=1e-5), (out2, ref2)

    print("KERNEL_OK")
</pallas_src>

<mosaic_0001>
module attributes {stable_mosaic.version = 11 : i64} {
  func.func @_dash_narrow_kernel(%arg0: i32, %arg1: memref<4xf32, #tpu.memory_space<smem>>, %arg2: memref<8x128xf32, #tpu.memory_space<vmem>>, %arg3: memref<2x128xf32, #tpu.memory_space<vmem>>, %arg4: memref<1x128xf32, #tpu.memory_space<vmem>>) attributes {dimension_semantics = [#tpu.dimension_semantics<parallel>], iteration_bounds = array<i64: 1>, scalar_prefetch = 1 : i64, scratch_operands = 0 : i64, tpu.core_type = #tpu.core_type<tc>, window_params = [{transform_indices = @transform_0, window_bounds = array<i64: 8, 128>}, {transform_indices = @transform_1, window_bounds = array<i64: 2, 128>}, {transform_indices = @transform_2, window_bounds = array<i64: 1, 128>}]} {
    %c0 = arith.constant 0 : index
    %0 = memref.load %arg1[%c0] : memref<4xf32, #tpu.memory_space<smem>>
    %c1 = arith.constant 1 : index
    %1 = memref.load %arg1[%c1] : memref<4xf32, #tpu.memory_space<smem>>
    %c2 = arith.constant 2 : index
    %2 = memref.load %arg1[%c2] : memref<4xf32, #tpu.memory_space<smem>>
    %c3 = arith.constant 3 : index
    %3 = memref.load %arg1[%c3] : memref<4xf32, #tpu.memory_space<smem>>
    %c0_0 = arith.constant 0 : index
    %c0_1 = arith.constant 0 : index
    %4 = vector.load %arg2[%c0_0, %c0_1] : memref<8x128xf32, #tpu.memory_space<vmem>>, vector<8x128xf32>
    %5 = math.log1p %4 : vector<8x128xf32>
    %cst = arith.constant dense<0.000000e+00> : vector<128xf32>
    %6 = vector.multi_reduction <add>, %5, %cst [0] : vector<8x128xf32> to vector<128xf32>
    %7 = vector.shape_cast %6 : vector<128xf32> to vector<1x128xf32>
    %c0_2 = arith.constant 0 : index
    %c0_3 = arith.constant 0 : index
    %8 = vector.load %arg3[%c0_2, %c0_3] : memref<2x128xf32, #tpu.memory_space<vmem>>, vector<1x128xf32>
    %c1_4 = arith.constant 1 : index
    %c0_5 = arith.constant 0 : index
    %9 = vector.load %arg3[%c1_4, %c0_5] : memref<2x128xf32, #tpu.memory_space<vmem>>, vector<1x128xf32>
    %10 = vector.broadcast %1 : f32 to vector<1x128xf32>
    %11 = arith.mulf %10, %8 : vector<1x128xf32>
    %12 = vector.broadcast %0 : f32 to vector<1x128xf32>
    %13 = arith.subf %12, %11 : vector<1x128xf32>
    %14 = vector.broadcast %2 : f32 to vector<1x128xf32>
    %15 = arith.mulf %14, %7 : vector<1x128xf32>
    %16 = arith.addf %13, %15 : vector<1x128xf32>
    %17 = math.log1p %9 : vector<1x128xf32>
    %18 = vector.broadcast %3 : f32 to vector<1x128xf32>
    %19 = arith.mulf %18, %17 : vector<1x128xf32>
    %20 = arith.addf %16, %19 : vector<1x128xf32>
    %21 = arith.negf %20 : vector<1x128xf32>
    %22 = math.exp %21 : vector<1x128xf32>
    %cst_6 = arith.constant 1.000000e+00 : f32
    %23 = vector.broadcast %cst_6 : f32 to vector<1x128xf32>
    %24 = arith.addf %23, %22 : vector<1x128xf32>
    %25 = arith.divf %23, %24 : vector<1x128xf32>
    %c0_7 = arith.constant 0 : index
    %c0_8 = arith.constant 0 : index
    %26 = vector.load %arg4[%c0_7, %c0_8] : memref<1x128xf32, #tpu.memory_space<vmem>>, vector<1x128xf32>
    tpu.vector_store %arg4[%c0_7, %c0_8], %25 {strides = array<i32>} : memref<1x128xf32, #tpu.memory_space<vmem>>, vector<1x128xf32>,
    return
  }
  func.func @transform_0(%arg0: i32, %arg1: memref<4xf32, #tpu.memory_space<smem>>) -> (i32, i32) {
    %c0_i32 = arith.constant 0 : i32
    %c0_i32_0 = arith.constant 0 : i32
    return %c0_i32, %arg0 : i32, i32
  }
  func.func @transform_1(%arg0: i32, %arg1: memref<4xf32, #tpu.memory_space<smem>>) -> (i32, i32) {
    %c0_i32 = arith.constant 0 : i32
    %c0_i32_0 = arith.constant 0 : i32
    return %c0_i32, %arg0 : i32, i32
  }
  func.func @transform_2(%arg0: i32, %arg1: memref<4xf32, #tpu.memory_space<smem>>) -> (i32, i32) {
    %c0_i32 = arith.constant 0 : i32
    %c0_i32_0 = arith.constant 0 : i32
    return %c0_i32, %arg0 : i32, i32
  }
}

</mosaic_0001>

<llo_original>
// kernel: dash_forward.1
$region0: #{dash_forward.1}
  #allocation0 [shape = 'u32[]', space=smem, size = 0x4, offset = 0x4, fixed_abs, tag = 'smem constant byte address 0x4 - core index']
  #allocation1 [shape = 'u32[144,128]{1,0:T(1,128)}', space=vmem, size = 0x12000, scoped, tag = 'internal scratch']
  #allocation2 [shape = 's32[1]{0}', space=sflag, size = 0x4, scoped, tag = 'scoped memory for dash_forward.1']
  #allocation3 [shape = 'u8[512]{0}', space=smem, size = 0x200, scoped, tag = 'prefetched SMEM operand 0']
  %s0 = inlined_call_operand.vmem [shape: f32[4], index: 0, kind: input, shape index: {}]
  %s1 = inlined_call_operand.vmem [shape: f32[8,4], index: 1, kind: input, shape index: {}]
  %s2 = inlined_call_operand.vmem [shape: f32[2,4], index: 2, kind: input, shape index: {}]
  %s3 = inlined_call_operand.hbm [shape: f32[1,4], index: 3, kind: output, shape index: {}]
  %s4 = sld [smem:[#allocation0]]
  $region18: #{dash_forward.1} parent=0
    _
  %s6 = ssub.s32 1, %s4
  %s7 = scalar_select 0, %s6, %s4
  %s8 = sshll.u32 %s0, 4
  %s9 = int_to_ptr.vmem [resolvable:$true] %s8
  %11 = dma.vmem_to_smem %s9, 16, [#allocation3], [#allocation2]
  %12 = dma.done [#allocation2], 16
  %13 = sfence
  $region1: #{dash_forward.1} parent=0
    #allocation4 [shape = 'u8[512]{0}', space=vmem, size = 0x400, scoped, tag = 'output window, operand 0, single buffered']
    #allocation5 [shape = 's32[1]{0}', space=sflag, size = 0x4, scoped, tag = 'scoped memory for dash_forward.1']
    %14 = vsyncpa [#allocation5], 0
    // Predicated region
    $region2: #{dash_forward.1} parent=1 // pred_check
      _
    $region3: #{dash_forward.1} parent=1 // pred_check_branch
      %16 = sbr.rel (0) target = $region5
    $region4: #{dash_forward.1} parent=1 // pred_region
      _
    $region5: #{dash_forward.1} parent=1 // pred_fallthru
      _
    // Predicated region
    $region6: #{dash_forward.1} parent=1 // pred_check
      _
    $region7: #{dash_forward.1} parent=1 // pred_check_branch
      %18 = sbr.rel (0) target = $region9
    $region8: #{dash_forward.1} parent=1 // pred_region
      _
    $region9: #{dash_forward.1} parent=1 // pred_fallthru
      _
    %s19 = sld [smem:[#allocation3]]
    %s20 = sld [smem:[#allocation3 + $0x1]]
    %s21 = sld [smem:[#allocation3 + $0x2]]
    %s22 = sld [smem:[#allocation3 + $0x3]]
    %v23 = vld [vmem:[%s1] sm:$0xff]
    %v24 = vadd.f32 %v23, 1.0
    %v25 = vlog2.pop %v24
    %v26 = vmul.f32 %v25, 0.6931472
    %v27 = vmul.f32 -0.5, %v23
    %v28 = vadd.f32 %v27, 1.0
    %v29 = vmul.f32 %v28, %v23
    %v30 = vand.u32 2147483647, %v23
    %vm31 = vcmp.lt.f32.partialorder %v30, 0.0004427343
    %v32 = vsel %vm31, %v29, %v26
    %v33 = vrot.slane %v32, 4
    %v34 = vadd.f32 %v32, %v33
    %v35 = vrot.slane %v34, 2
    %v36 = vadd.f32 %v34, %v35
    %v37 = vrot.slane %v36, 1
    %v38 = vadd.f32 %v36, %v37
    %v39 = vld [vmem:[%s2] sm:$0x1]
    %v40 = vld [vmem:[%s2 + $0x1] sm:$0x1]
    %v41 = vstv %s20
    %v42 = vmul.f32 %v41, %v39
    %v43 = vstv %s19
    %v44 = vsub.f32 %v43, %v42
    %v45 = vstv %s21
    %v46 = vmul.f32 %v45, %v38
    %v47 = vadd.f32 %v44, %v46
    %v48 = vadd.f32 %v40, 1.0
    %v49 = vlog2.pop %v48
    %v50 = vmul.f32 %v49, 0.6931472
    %v51 = vmul.f32 -0.5, %v40
    %v52 = vadd.f32 %v51, 1.0
    %v53 = vmul.f32 %v52, %v40
    %v54 = vand.u32 2147483647, %v40
    %vm55 = vcmp.lt.f32.partialorder %v54, 0.0004427343
    %v56 = vsel %vm55, %v53, %v50
    %v57 = vstv %s22
    %v58 = vmul.f32 %v57, %v56
    %v59 = vadd.f32 %v47, %v58
    %v60 = vxor.u32 %v59, 2147483648
    %v61 = vmul.f32 %v60, 1.442695
    %v62 = vpow.pop %v61
    %v63 = vadd.f32 %v62, 1.0
    %v64 = vrcp.pop %v63
    %v65 = vmul.f32 1.0, %v64
    %66 = vst [vmem:[#allocation4] sm:$0x1] %v65
    // Predicated region
    $region10: #{dash_forward.1} parent=1 // pred_check
      _
    $region11: #{dash_forward.1} parent=1 // pred_check_branch
      %68 = sbr.rel (0) target = $region13
    $region12: #{dash_forward.1} parent=1 // pred_region
      %s70 = ssub.s32 16, 16
      %71 = vsyncadd [#allocation5], %s70
      %s73 = sshll.u32 [#allocation4], 4
      %s74 = int_to_ptr.vmem [resolvable:$true] %s73
      %76 = dma.vmem_to_hbm [thread:$0]  %s74, 16, %s3, [#allocation5]
    $region13: #{dash_forward.1} parent=1 // pred_fallthru
      _
    // Predicated region
    $region14: #{dash_forward.1} parent=1 // pred_check
      _
    $region15: #{dash_forward.1} parent=1 // pred_check_branch
      %78 = sbr.rel (0) target = $region17
    $region16: #{dash_forward.1} parent=1 // pred_region
      %79 = dma.done [#allocation5], 16
    $region17: #{dash_forward.1} parent=1 // pred_fallthru
      _
    %80 = vsyncpa [#allocation5], 1

</llo_original>
